<compile_context>
chip_gen: v7x
topology: tpu7x:2x2x1
jax: 0.10.0
libtpu: 0.0.40
codegen_flags: <defaults>
</compile_context>

<pallas_src>
import jax
import jax.numpy as jnp
from jax import lax
from jax.experimental import pallas as pl
from jax.experimental.pallas import tpu as pltpu

HIDDEN_SIZE = 32
INPUT_SIZE = 1


def rnn_kernel(x_ref, h0_ref, wih_ref, whh_ref, b_ref, wout_ref, bout_ref,
               y_ref, hT_ref, buf_ref):
    """One (batch-block, time-tile) grid step of the tanh RNN + Linear head.

    Block shapes (float32), with BB = batch rows per block, TT = time steps
    per tile, BH = BB * HIDDEN_SIZE:
      x_ref    : (BB, 1, TT)  input, T lane-dense                   [VMEM]
      h0_ref   : (1, 1, BH)   initial hidden state for this block   [VMEM]
      wih_ref  : (BB, BH)     block-diagonal W_ih^T                 [VMEM]
      whh_ref  : (BH, BH)     block-diagonal W_hh^T                 [VMEM]
      b_ref    : (1, BH)      b_ih + b_hh (tiled per batch row)     [VMEM]
      wout_ref : (BH, BB)     block-diagonal Linear(H->1) weight    [VMEM]
      bout_ref : (1, 1)       Linear bias (scalar)                  [SMEM]
      y_ref    : (BB, 1, TT)  per-step outputs, T lane-dense        [VMEM]
      hT_ref   : (1, 1, BH)   carried / final hidden state          [VMEM]
      buf_ref  : (TT, BH)     scratch reused for xpre then h_t      [VMEM]
    """
    TT = x_ref.shape[2]
    BH = whh_ref.shape[0]

    # Initialise the carried hidden state at the first time tile of this batch
    # block; the hT output block is resident across the (arbitrary) time axis.
    @pl.when(pl.program_id(1) == 0)
    def _():
        hT_ref[...] = h0_ref[...]

    whh = whh_ref[...]                                    # (BH, BH) in vregs

    # ---- Pre-pass (h-independent, one MXU op per time tile):
    #   buf[t, b*H + h] = x[b, t] * W_ih[h, 0] + (b_ih + b_hh)[h]
    xt = x_ref[...][:, 0, :].T                            # (TT, BB)
    buf_ref[...] = (jnp.dot(xt, wih_ref[...],
                            preferred_element_type=jnp.float32)
                    + b_ref[...])                         # (TT, BH)

    # ---- Serial recurrence.  The scratch is reused in place: row t holds the
    # input pre-activation before step t and the hidden state h_t afterwards
    # (read strictly before write within each step).
    def step(i, h):                                       # h: (1, BH)
        xp = buf_ref[pl.ds(i, 1), :]                      # (1, BH)   xpre_t
        h_new = jnp.tanh(xp + jnp.dot(h, whh,
                                      preferred_element_type=jnp.float32))
        buf_ref[pl.ds(i, 1), :] = h_new                   # overwrite -> h_t
        return h_new

    unroll = 16
    while unroll > 1 and TT % unroll:
        unroll //= 2
    h = hT_ref[...].reshape(1, BH)                        # carried across tiles
    h = lax.fori_loop(0, TT, step, h, unroll=unroll)
    hT_ref[...] = h.reshape(1, 1, BH)

    # ---- Bulk output head (outside the serial loop): one MXU matmul + one
    # small transpose, stored lane-dense.
    #   y[b, t] = sum_h h_t[b, h] * w_out[h] + b_out
    yt = jnp.dot(buf_ref[...], wout_ref[...],
                 preferred_element_type=jnp.float32)      # (TT, BB)
    y_ref[...] = (yt.T + bout_ref[0, 0])[:, None, :]      # (BB, 1, TT)


def _pick_time_tile(T):
    """Whole T for short sequences, otherwise a lane-aligned (multiple of 128)
    divisor of T so x/y blocks stay dense and VMEM stays bounded in T."""
    if T <= 512:
        return T
    for tt in (512, 384, 256, 128):
        if T % tt == 0:
            return tt
    return T  # fallback: one big tile (raise vmem_limit for very long T)


def rnn_forward(x_btI, h_state, params, *, time_block=None, batch_block=None):
    """Mirrors RNN.forward(x, h_state) of the PyTorch module.

    x_btI   : (B, T, I) float32  (batch_first, like PyTorch)
    h_state : (1, B, H) float32 or None
    returns : (y (B, T, 1), h_state (1, B, H))

    batch_block: rows per grid step on the 'parallel' batch axis.  Default (B)
      runs one recurrence over the whole batch; batch_block=1 splits the batch
      across TensorCores on multi-core parts (e.g. v7x).  Note the expanded
      block-diagonal W_hh grows as (batch_block*H)^2 -- keep it small.
    time_block: time steps per grid step on the 'arbitrary' time axis; must
      divide T and (unless == T) be a multiple of 128.
    """
    B, T, I = x_btI.shape
    H = HIDDEN_SIZE
    assert I == INPUT_SIZE and T >= 1

    BB = B if batch_block is None else batch_block
    assert B % BB == 0
    nb = B // BB

    TT = _pick_time_tile(T) if time_block is None else time_block
    assert T % TT == 0
    assert TT == T or TT % 128 == 0, "time_block must be a multiple of 128"
    nt = T // TT
    BH = BB * H

    f32 = jnp.float32
    # Per-batch-block block-diagonal weights: one (1,BH)@(BH,BH) MXU op per
    # recurrence step covers all BB batch rows of the block.
    eye = jnp.eye(BB, dtype=f32)
    wih_big = jnp.kron(eye, params["w_ih"].T.astype(f32))                  # (BB, BH)
    whh_big = jnp.kron(eye, params["w_hh"].T.astype(f32))                  # (BH, BH)
    bias_big = jnp.tile((params["b_ih"] + params["b_hh"]).astype(f32)
                        .reshape(1, H), (1, BB))                           # (1, BH)
    wout_big = jnp.kron(eye, params["w_out"].astype(f32).reshape(H, 1))    # (BH, BB)
    bout = params["b_out"].astype(f32).reshape(1, 1)                       # (1, 1)

    x_b1t = jnp.transpose(x_btI.astype(f32), (0, 2, 1))                    # (B, 1, T)
    if h_state is None:
        h0 = jnp.zeros((B, H), f32)
    else:
        h0 = h_state[0].astype(f32)
    h0_blk = h0.reshape(nb, 1, BH)                                         # (nb, 1, BH)

    y_b1t, hT_blk = pl.pallas_call(
        rnn_kernel,
        out_shape=(
            jax.ShapeDtypeStruct((B, 1, T), f32),
            jax.ShapeDtypeStruct((nb, 1, BH), f32),
        ),
        grid=(nb, nt),
        in_specs=[
            pl.BlockSpec((BB, 1, TT), lambda b, t: (b, 0, t)),   # x (lane-dense T)
            pl.BlockSpec((1, 1, BH), lambda b, t: (b, 0, 0)),    # h0
            pl.BlockSpec((BB, BH), lambda b, t: (0, 0)),         # W_ih^T (blockdiag)
            pl.BlockSpec((BH, BH), lambda b, t: (0, 0)),         # W_hh^T (blockdiag)
            pl.BlockSpec((1, BH), lambda b, t: (0, 0)),          # b_ih + b_hh
            pl.BlockSpec((BH, BB), lambda b, t: (0, 0)),         # W_out (blockdiag)
            pl.BlockSpec(memory_space=pltpu.MemorySpace.SMEM),   # b_out scalar
        ],
        out_specs=(
            pl.BlockSpec((BB, 1, TT), lambda b, t: (b, 0, t)),   # y (lane-dense T)
            pl.BlockSpec((1, 1, BH), lambda b, t: (b, 0, 0)),    # h carry / h_T
        ),
        scratch_shapes=[
            pltpu.VMEM((TT, BH), f32),       # xpre / hall, reused in place
        ],
        compiler_params=pltpu.CompilerParams(
            dimension_semantics=("parallel", "arbitrary"),
            vmem_limit_bytes=64 * 1024 * 1024,
        ),
    )(x_b1t, h0_blk, wih_big, whh_big, bias_big, wout_big, bout)

    y = jnp.transpose(y_b1t, (0, 2, 1))            # (B, T, 1)
    hT = hT_blk.reshape(B, H)
    return y, hT[None, :, :]                       # h_state: (1, B, H)


def init_params(key):
    """Deterministic parameter init matching PyTorch's default shapes/ranges."""
    H, I = HIDDEN_SIZE, INPUT_SIZE
    k_rnn = 1.0 / jnp.sqrt(jnp.float32(H))
    k_lin = 1.0 / jnp.sqrt(jnp.float32(H))
    ks = jax.random.split(key, 6)
    u = lambda k, shape, b: jax.random.uniform(k, shape, jnp.float32, -b, b)
    return {
        "w_ih": u(ks[0], (H, I), k_rnn),    # rnn.weight_ih_l0
        "w_hh": u(ks[1], (H, H), k_rnn),    # rnn.weight_hh_l0
        "b_ih": u(ks[2], (H,), k_rnn),      # rnn.bias_ih_l0
        "b_hh": u(ks[3], (H,), k_rnn),      # rnn.bias_hh_l0
        "w_out": u(ks[4], (1, H), k_lin),   # out.weight
        "b_out": u(ks[5], (1,), k_lin),     # out.bias
    }


def rnn_forward_ref(x_btI, h_state, params):
    """Pure-JAX reference (lax.scan) for a sanity check."""
    B, T, I = x_btI.shape
    H = HIDDEN_SIZE
    h0 = jnp.zeros((B, H), jnp.float32) if h_state is None else h_state[0]

    def step(h, xt):
        h_new = jnp.tanh(xt @ params["w_ih"].T + params["b_ih"]
                         + h @ params["w_hh"].T + params["b_hh"])
        y_t = h_new @ params["w_out"].T + params["b_out"]
        return h_new, y_t

    hT, ys = lax.scan(step, h0, jnp.transpose(x_btI, (1, 0, 2)))
    return jnp.transpose(ys, (1, 0, 2)), hT[None, :, :]


if __name__ == "__main__":
    key = jax.random.PRNGKey(0)
    pkey, xkey = jax.random.split(key)
    params = init_params(pkey)

    # --- Primary small test (matches the module defaults): B=2, T=8, h=None.
    B, T = 2, 8
    x = jax.random.normal(xkey, (B, T, INPUT_SIZE), dtype=jnp.float32)
    h_state = None

    y, h_new = rnn_forward(x, h_state, params)
    y = jax.block_until_ready(y)
    h_new = jax.block_until_ready(h_new)

    y_ref, h_ref = rnn_forward_ref(x, h_state, params)
    assert y.shape == (B, T, 1) and h_new.shape == (1, B, HIDDEN_SIZE)
    assert jnp.allclose(y, y_ref, atol=1e-5, rtol=1e-5)
    assert jnp.allclose(h_new, h_ref, atol=1e-5, rtol=1e-5)

    # --- Exercise the tiled path: time tiles (T=512, TT=128) carried via the
    # resident hT block, and the per-core batch split (batch_block=1).
    T2 = 512
    x2 = jax.random.normal(jax.random.PRNGKey(1), (B, T2, INPUT_SIZE),
                           dtype=jnp.float32)
    h02 = 0.1 * jax.random.normal(jax.random.PRNGKey(2), (1, B, HIDDEN_SIZE),
                                  dtype=jnp.float32)
    y2, h2 = rnn_forward(x2, h02, params, time_block=128, batch_block=1)
    y2 = jax.block_until_ready(y2)
    h2 = jax.block_until_ready(h2)
    y2_ref, h2_ref = rnn_forward_ref(x2, h02, params)
    assert jnp.allclose(y2, y2_ref, atol=1e-4, rtol=1e-4)
    assert jnp.allclose(h2, h2_ref, atol=1e-4, rtol=1e-4)

    print("KERNEL_OK")
</pallas_src>

<mosaic_0001>
module attributes {stable_mosaic.version = 11 : i64} {
  func.func @rnn_kernel(%arg0: i32, %arg1: i32, %arg2: memref<2x1x8xf32, #tpu.memory_space<vmem>>, %arg3: memref<1x1x64xf32, #tpu.memory_space<vmem>>, %arg4: memref<2x64xf32, #tpu.memory_space<vmem>>, %arg5: memref<64x64xf32, #tpu.memory_space<vmem>>, %arg6: memref<1x64xf32, #tpu.memory_space<vmem>>, %arg7: memref<64x2xf32, #tpu.memory_space<vmem>>, %arg8: memref<1x1xf32, #tpu.memory_space<smem>>, %arg9: memref<2x1x8xf32, #tpu.memory_space<vmem>>, %arg10: memref<1x1x64xf32, #tpu.memory_space<vmem>>, %arg11: memref<8x64xf32, #tpu.memory_space<vmem>>) attributes {dimension_semantics = [#tpu.dimension_semantics<parallel>, #tpu.dimension_semantics<arbitrary>], iteration_bounds = array<i64: 1, 1>, scalar_prefetch = 0 : i64, scratch_operands = 1 : i64, tpu.core_type = #tpu.core_type<tc>, window_params = [{transform_indices = @transform_0, window_bounds = array<i64: 2, 1, 8>}, {transform_indices = @transform_1, window_bounds = array<i64: 1, 1, 64>}, {pipeline_mode = #tpu.pipeline_mode<synchronous>, transform_indices = @transform_2, window_bounds = array<i64: 2, 64>}, {pipeline_mode = #tpu.pipeline_mode<synchronous>, transform_indices = @transform_3, window_bounds = array<i64: 64, 64>}, {pipeline_mode = #tpu.pipeline_mode<synchronous>, transform_indices = @transform_4, window_bounds = array<i64: 1, 64>}, {pipeline_mode = #tpu.pipeline_mode<synchronous>, transform_indices = @transform_5, window_bounds = array<i64: 64, 2>}, {transform_indices = @transform_6, window_bounds = array<i64: 1, 1>}, {transform_indices = @transform_7, window_bounds = array<i64: 2, 1, 8>}, {transform_indices = @transform_8, window_bounds = array<i64: 1, 1, 64>}]} {
    %c0_i32 = arith.constant 0 : i32
    %0 = arith.cmpi eq, %arg1, %c0_i32 : i32
    %1 = arith.extui %0 : i1 to i32
    %c0_i32_0 = arith.constant 0 : i32
    %2 = arith.cmpi ne, %1, %c0_i32_0 : i32
    scf.if %2 {
      %c0_52 = arith.constant 0 : index
      %c0_53 = arith.constant 0 : index
      %c0_54 = arith.constant 0 : index
      %82 = vector.load %arg3[%c0_52, %c0_53, %c0_54] : memref<1x1x64xf32, #tpu.memory_space<vmem>>, vector<1x1x64xf32>
      %c0_55 = arith.constant 0 : index
      %c0_56 = arith.constant 0 : index
      %c0_57 = arith.constant 0 : index
      %83 = vector.load %arg10[%c0_55, %c0_56, %c0_57] : memref<1x1x64xf32, #tpu.memory_space<vmem>>, vector<1x1x64xf32>
      tpu.vector_store %arg10[%c0_55, %c0_56, %c0_57], %82 {strides = array<i32>} : memref<1x1x64xf32, #tpu.memory_space<vmem>>, vector<1x1x64xf32>,
    } else {
    }
    %c0 = arith.constant 0 : index
    %c0_1 = arith.constant 0 : index
    %3 = vector.load %arg5[%c0, %c0_1] : memref<64x64xf32, #tpu.memory_space<vmem>>, vector<64x64xf32>
    %c0_2 = arith.constant 0 : index
    %c0_3 = arith.constant 0 : index
    %c0_4 = arith.constant 0 : index
    %4 = vector.load %arg2[%c0_2, %c0_3, %c0_4] : memref<2x1x8xf32, #tpu.memory_space<vmem>>, vector<2x1x8xf32>
    %5 = vector.shape_cast %4 : vector<2x1x8xf32> to vector<2x8xf32>
    %6 = tpu.transpose %5, [1, 0] : vector<2x8xf32> -> vector<8x2xf32>
    %c0_5 = arith.constant 0 : index
    %c0_6 = arith.constant 0 : index
    %7 = vector.load %arg4[%c0_5, %c0_6] : memref<2x64xf32, #tpu.memory_space<vmem>>, vector<2x64xf32>
    %cst = arith.constant dense<0.000000e+00> : vector<8x64xf32>
    %8 = tpu.matmul %6, %7, %cst {dimension_numbers = #tpu.dot_dimension_numbers<[1], [0], [0], [1], [0, 0, 1, 1], [], []>} : vector<8x2xf32>, vector<2x64xf32>, vector<8x64xf32> -> vector<8x64xf32>
    %c0_7 = arith.constant 0 : index
    %c0_8 = arith.constant 0 : index
    %9 = vector.load %arg6[%c0_7, %c0_8] : memref<1x64xf32, #tpu.memory_space<vmem>>, vector<1x64xf32>
    %10 = vector.broadcast %9 : vector<1x64xf32> to vector<8x64xf32>
    %11 = arith.addf %8, %10 : vector<8x64xf32>
    %c0_9 = arith.constant 0 : index
    %c0_10 = arith.constant 0 : index
    %12 = vector.load %arg11[%c0_9, %c0_10] : memref<8x64xf32, #tpu.memory_space<vmem>>, vector<8x64xf32>
    tpu.vector_store %arg11[%c0_9, %c0_10], %11 {strides = array<i32>} : memref<8x64xf32, #tpu.memory_space<vmem>>, vector<8x64xf32>,
    %c0_11 = arith.constant 0 : index
    %c0_12 = arith.constant 0 : index
    %c0_13 = arith.constant 0 : index
    %13 = vector.load %arg10[%c0_11, %c0_12, %c0_13] : memref<1x1x64xf32, #tpu.memory_space<vmem>>, vector<1x1x64xf32>
    %14 = vector.shape_cast %13 : vector<1x1x64xf32> to vector<1x64xf32>
    %c0_i32_14 = arith.constant 0 : i32
    %15 = arith.index_cast %c0_i32_14 : i32 to index
    %c0_15 = arith.constant 0 : index
    %16 = vector.load %arg11[%15, %c0_15] : memref<8x64xf32, #tpu.memory_space<vmem>>, vector<1x64xf32>
    %cst_16 = arith.constant dense<0.000000e+00> : vector<1x64xf32>
    %17 = tpu.matmul %14, %3, %cst_16 {dimension_numbers = #tpu.dot_dimension_numbers<[1], [0], [0], [1], [0, 0, 1, 1], [], []>} : vector<1x64xf32>, vector<64x64xf32>, vector<1x64xf32> -> vector<1x64xf32>
    %18 = arith.addf %16, %17 : vector<1x64xf32>
    %19 = math.tanh %18 : vector<1x64xf32>
    %20 = arith.index_cast %c0_i32_14 : i32 to index
    %c0_17 = arith.constant 0 : index
    %21 = vector.load %arg11[%20, %c0_17] : memref<8x64xf32, #tpu.memory_space<vmem>>, vector<1x64xf32>
    tpu.vector_store %arg11[%20, %c0_17], %19 {strides = array<i32>} : memref<8x64xf32, #tpu.memory_space<vmem>>, vector<1x64xf32>,
    %c1_i32 = arith.constant 1 : i32
    %22 = arith.index_cast %c1_i32 : i32 to index
    %c0_18 = arith.constant 0 : index
    %23 = vector.load %arg11[%22, %c0_18] : memref<8x64xf32, #tpu.memory_space<vmem>>, vector<1x64xf32>
    %cst_19 = arith.constant dense<0.000000e+00> : vector<1x64xf32>
    %24 = tpu.matmul %19, %3, %cst_19 {dimension_numbers = #tpu.dot_dimension_numbers<[1], [0], [0], [1], [0, 0, 1, 1], [], []>} : vector<1x64xf32>, vector<64x64xf32>, vector<1x64xf32> -> vector<1x64xf32>
    %25 = arith.addf %23, %24 : vector<1x64xf32>
    %26 = math.tanh %25 : vector<1x64xf32>
    %27 = arith.index_cast %c1_i32 : i32 to index
    %c0_20 = arith.constant 0 : index
    %28 = vector.load %arg11[%27, %c0_20] : memref<8x64xf32, #tpu.memory_space<vmem>>, vector<1x64xf32>
    tpu.vector_store %arg11[%27, %c0_20], %26 {strides = array<i32>} : memref<8x64xf32, #tpu.memory_space<vmem>>, vector<1x64xf32>,
    %c2_i32 = arith.constant 2 : i32
    %29 = arith.index_cast %c2_i32 : i32 to index
    %c0_21 = arith.constant 0 : index
    %30 = vector.load %arg11[%29, %c0_21] : memref<8x64xf32, #tpu.memory_space<vmem>>, vector<1x64xf32>
    %cst_22 = arith.constant dense<0.000000e+00> : vector<1x64xf32>
    %31 = tpu.matmul %26, %3, %cst_22 {dimension_numbers = #tpu.dot_dimension_numbers<[1], [0], [0], [1], [0, 0, 1, 1], [], []>} : vector<1x64xf32>, vector<64x64xf32>, vector<1x64xf32> -> vector<1x64xf32>
    %32 = arith.addf %30, %31 : vector<1x64xf32>
    %33 = math.tanh %32 : vector<1x64xf32>
    %34 = arith.index_cast %c2_i32 : i32 to index
    %c0_23 = arith.constant 0 : index
    %35 = vector.load %arg11[%34, %c0_23] : memref<8x64xf32, #tpu.memory_space<vmem>>, vector<1x64xf32>
    tpu.vector_store %arg11[%34, %c0_23], %33 {strides = array<i32>} : memref<8x64xf32, #tpu.memory_space<vmem>>, vector<1x64xf32>,
    %c3_i32 = arith.constant 3 : i32
    %36 = arith.index_cast %c3_i32 : i32 to index
    %c0_24 = arith.constant 0 : index
    %37 = vector.load %arg11[%36, %c0_24] : memref<8x64xf32, #tpu.memory_space<vmem>>, vector<1x64xf32>
    %cst_25 = arith.constant dense<0.000000e+00> : vector<1x64xf32>
    %38 = tpu.matmul %33, %3, %cst_25 {dimension_numbers = #tpu.dot_dimension_numbers<[1], [0], [0], [1], [0, 0, 1, 1], [], []>} : vector<1x64xf32>, vector<64x64xf32>, vector<1x64xf32> -> vector<1x64xf32>
    %39 = arith.addf %37, %38 : vector<1x64xf32>
    %40 = math.tanh %39 : vector<1x64xf32>
    %41 = arith.index_cast %c3_i32 : i32 to index
    %c0_26 = arith.constant 0 : index
    %42 = vector.load %arg11[%41, %c0_26] : memref<8x64xf32, #tpu.memory_space<vmem>>, vector<1x64xf32>
    tpu.vector_store %arg11[%41, %c0_26], %40 {strides = array<i32>} : memref<8x64xf32, #tpu.memory_space<vmem>>, vector<1x64xf32>,
    %c4_i32 = arith.constant 4 : i32
    %43 = arith.index_cast %c4_i32 : i32 to index
    %c0_27 = arith.constant 0 : index
    %44 = vector.load %arg11[%43, %c0_27] : memref<8x64xf32, #tpu.memory_space<vmem>>, vector<1x64xf32>
    %cst_28 = arith.constant dense<0.000000e+00> : vector<1x64xf32>
    %45 = tpu.matmul %40, %3, %cst_28 {dimension_numbers = #tpu.dot_dimension_numbers<[1], [0], [0], [1], [0, 0, 1, 1], [], []>} : vector<1x64xf32>, vector<64x64xf32>, vector<1x64xf32> -> vector<1x64xf32>
    %46 = arith.addf %44, %45 : vector<1x64xf32>
    %47 = math.tanh %46 : vector<1x64xf32>
    %48 = arith.index_cast %c4_i32 : i32 to index
    %c0_29 = arith.constant 0 : index
    %49 = vector.load %arg11[%48, %c0_29] : memref<8x64xf32, #tpu.memory_space<vmem>>, vector<1x64xf32>
    tpu.vector_store %arg11[%48, %c0_29], %47 {strides = array<i32>} : memref<8x64xf32, #tpu.memory_space<vmem>>, vector<1x64xf32>,
    %c5_i32 = arith.constant 5 : i32
    %50 = arith.index_cast %c5_i32 : i32 to index
    %c0_30 = arith.constant 0 : index
    %51 = vector.load %arg11[%50, %c0_30] : memref<8x64xf32, #tpu.memory_space<vmem>>, vector<1x64xf32>
    %cst_31 = arith.constant dense<0.000000e+00> : vector<1x64xf32>
    %52 = tpu.matmul %47, %3, %cst_31 {dimension_numbers = #tpu.dot_dimension_numbers<[1], [0], [0], [1], [0, 0, 1, 1], [], []>} : vector<1x64xf32>, vector<64x64xf32>, vector<1x64xf32> -> vector<1x64xf32>
    %53 = arith.addf %51, %52 : vector<1x64xf32>
    %54 = math.tanh %53 : vector<1x64xf32>
    %55 = arith.index_cast %c5_i32 : i32 to index
    %c0_32 = arith.constant 0 : index
    %56 = vector.load %arg11[%55, %c0_32] : memref<8x64xf32, #tpu.memory_space<vmem>>, vector<1x64xf32>
    tpu.vector_store %arg11[%55, %c0_32], %54 {strides = array<i32>} : memref<8x64xf32, #tpu.memory_space<vmem>>, vector<1x64xf32>,
    %c6_i32 = arith.constant 6 : i32
    %57 = arith.index_cast %c6_i32 : i32 to index
    %c0_33 = arith.constant 0 : index
    %58 = vector.load %arg11[%57, %c0_33] : memref<8x64xf32, #tpu.memory_space<vmem>>, vector<1x64xf32>
    %cst_34 = arith.constant dense<0.000000e+00> : vector<1x64xf32>
    %59 = tpu.matmul %54, %3, %cst_34 {dimension_numbers = #tpu.dot_dimension_numbers<[1], [0], [0], [1], [0, 0, 1, 1], [], []>} : vector<1x64xf32>, vector<64x64xf32>, vector<1x64xf32> -> vector<1x64xf32>
    %60 = arith.addf %58, %59 : vector<1x64xf32>
    %61 = math.tanh %60 : vector<1x64xf32>
    %62 = arith.index_cast %c6_i32 : i32 to index
    %c0_35 = arith.constant 0 : index
    %63 = vector.load %arg11[%62, %c0_35] : memref<8x64xf32, #tpu.memory_space<vmem>>, vector<1x64xf32>
    tpu.vector_store %arg11[%62, %c0_35], %61 {strides = array<i32>} : memref<8x64xf32, #tpu.memory_space<vmem>>, vector<1x64xf32>,
    %c7_i32 = arith.constant 7 : i32
    %64 = arith.index_cast %c7_i32 : i32 to index
    %c0_36 = arith.constant 0 : index
    %65 = vector.load %arg11[%64, %c0_36] : memref<8x64xf32, #tpu.memory_space<vmem>>, vector<1x64xf32>
    %cst_37 = arith.constant dense<0.000000e+00> : vector<1x64xf32>
    %66 = tpu.matmul %61, %3, %cst_37 {dimension_numbers = #tpu.dot_dimension_numbers<[1], [0], [0], [1], [0, 0, 1, 1], [], []>} : vector<1x64xf32>, vector<64x64xf32>, vector<1x64xf32> -> vector<1x64xf32>
    %67 = arith.addf %65, %66 : vector<1x64xf32>
    %68 = math.tanh %67 : vector<1x64xf32>
    %69 = arith.index_cast %c7_i32 : i32 to index
    %c0_38 = arith.constant 0 : index
    %70 = vector.load %arg11[%69, %c0_38] : memref<8x64xf32, #tpu.memory_space<vmem>>, vector<1x64xf32>
    tpu.vector_store %arg11[%69, %c0_38], %68 {strides = array<i32>} : memref<8x64xf32, #tpu.memory_space<vmem>>, vector<1x64xf32>,
    %c8_i32 = arith.constant 8 : i32
    %71 = vector.shape_cast %68 : vector<1x64xf32> to vector<1x1x64xf32>
    %c0_39 = arith.constant 0 : index
    %c0_40 = arith.constant 0 : index
    %c0_41 = arith.constant 0 : index
    %72 = vector.load %arg10[%c0_39, %c0_40, %c0_41] : memref<1x1x64xf32, #tpu.memory_space<vmem>>, vector<1x1x64xf32>
    tpu.vector_store %arg10[%c0_39, %c0_40, %c0_41], %71 {strides = array<i32>} : memref<1x1x64xf32, #tpu.memory_space<vmem>>, vector<1x1x64xf32>,
    %c0_42 = arith.constant 0 : index
    %c0_43 = arith.constant 0 : index
    %73 = vector.load %arg11[%c0_42, %c0_43] : memref<8x64xf32, #tpu.memory_space<vmem>>, vector<8x64xf32>
    %c0_44 = arith.constant 0 : index
    %c0_45 = arith.constant 0 : index
    %74 = vector.load %arg7[%c0_44, %c0_45] : memref<64x2xf32, #tpu.memory_space<vmem>>, vector<64x2xf32>
    %cst_46 = arith.constant dense<0.000000e+00> : vector<8x2xf32>
    %75 = tpu.matmul %73, %74, %cst_46 {dimension_numbers = #tpu.dot_dimension_numbers<[1], [0], [0], [1], [0, 0, 1, 1], [], []>} : vector<8x64xf32>, vector<64x2xf32>, vector<8x2xf32> -> vector<8x2xf32>
    %76 = tpu.transpose %75, [1, 0] : vector<8x2xf32> -> vector<2x8xf32>
    %c0_47 = arith.constant 0 : index
    %c0_48 = arith.constant 0 : index
    %77 = memref.load %arg8[%c0_47, %c0_48] : memref<1x1xf32, #tpu.memory_space<smem>>
    %78 = vector.broadcast %77 : f32 to vector<2x8xf32>
    %79 = arith.addf %76, %78 : vector<2x8xf32>
    %80 = vector.shape_cast %79 : vector<2x8xf32> to vector<2x1x8xf32>
    %c0_49 = arith.constant 0 : index
    %c0_50 = arith.constant 0 : index
    %c0_51 = arith.constant 0 : index
    %81 = vector.load %arg9[%c0_49, %c0_50, %c0_51] : memref<2x1x8xf32, #tpu.memory_space<vmem>>, vector<2x1x8xf32>
    tpu.vector_store %arg9[%c0_49, %c0_50, %c0_51], %80 {strides = array<i32>} : memref<2x1x8xf32, #tpu.memory_space<vmem>>, vector<2x1x8xf32>,
    return
  }
  func.func @transform_0(%arg0: i32, %arg1: i32) -> (i32, i32, i32) {
    %c0_i32 = arith.constant 0 : i32
    %c0_i32_0 = arith.constant 0 : i32
    return %arg0, %c0_i32, %arg1 : i32, i32, i32
  }
  func.func @transform_1(%arg0: i32, %arg1: i32) -> (i32, i32, i32) {
    %c0_i32 = arith.constant 0 : i32
    %c0_i32_0 = arith.constant 0 : i32
    %c0_i32_1 = arith.constant 0 : i32
    return %arg0, %c0_i32, %c0_i32_0 : i32, i32, i32
  }
  func.func @transform_2(%arg0: i32, %arg1: i32) -> (i32, i32) {
    %c0_i32 = arith.constant 0 : i32
    %c0_i32_0 = arith.constant 0 : i32
    %c0_i32_1 = arith.constant 0 : i32
    return %c0_i32, %c0_i32_0 : i32, i32
  }
  func.func @transform_3(%arg0: i32, %arg1: i32) -> (i32, i32) {
    %c0_i32 = arith.constant 0 : i32
    %c0_i32_0 = arith.constant 0 : i32
    %c0_i32_1 = arith.constant 0 : i32
    return %c0_i32, %c0_i32_0 : i32, i32
  }
  func.func @transform_4(%arg0: i32, %arg1: i32) -> (i32, i32) {
    %c0_i32 = arith.constant 0 : i32
    %c0_i32_0 = arith.constant 0 : i32
    %c0_i32_1 = arith.constant 0 : i32
    return %c0_i32, %c0_i32_0 : i32, i32
  }
  func.func @transform_5(%arg0: i32, %arg1: i32) -> (i32, i32) {
    %c0_i32 = arith.constant 0 : i32
    %c0_i32_0 = arith.constant 0 : i32
    %c0_i32_1 = arith.constant 0 : i32
    return %c0_i32, %c0_i32_0 : i32, i32
  }
  func.func @transform_6(%arg0: i32, %arg1: i32) -> (i32, i32) {
    %c0_i32 = arith.constant 0 : i32
    %c0_i32_0 = arith.constant 0 : i32
    %c0_i32_1 = arith.constant 0 : i32
    return %c0_i32, %c0_i32_0 : i32, i32
  }
  func.func @transform_7(%arg0: i32, %arg1: i32) -> (i32, i32, i32) {
    %c0_i32 = arith.constant 0 : i32
    %c0_i32_0 = arith.constant 0 : i32
    return %arg0, %c0_i32, %arg1 : i32, i32, i32
  }
  func.func @transform_8(%arg0: i32, %arg1: i32) -> (i32, i32, i32) {
    %c0_i32 = arith.constant 0 : i32
    %c0_i32_0 = arith.constant 0 : i32
    %c0_i32_1 = arith.constant 0 : i32
    return %arg0, %c0_i32, %c0_i32_0 : i32, i32, i32
  }
}

</mosaic_0001>

<llo_original>
// kernel: tpu_custom_call.1
$region0: #{tpu_custom_call.1}
  #allocation0 [shape = 'u32[]', space=smem, size = 0x4, offset = 0x4, fixed_abs, tag = 'smem constant byte address 0x4 - core index']
  #allocation1 [shape = 'u32[144,128]{1,0:T(1,128)}', space=vmem, size = 0x12000, scoped, tag = 'internal scratch']
  #allocation2 [shape = 'f32[8,64]{1,0:T(8,128)}', space=vmem, size = 0x1000, scoped, tag = 'scratch operand']
  #allocation3 [shape = 'f32[1,1]{1,0:T(1,128)S(6)}', space=smem, size = 0x200, scoped, tag = 'scoped memory for tpu_custom_call.1']
  %s0 = inlined_call_operand.hbm [shape: f32[2,1,8], index: 0, kind: input, shape index: {}]
  %s1 = inlined_call_operand.hbm [shape: f32[1,1,64], index: 1, kind: input, shape index: {}]
  %s2 = inlined_call_operand.hbm [shape: f32[2,64], index: 2, kind: input, shape index: {}]
  %s3 = inlined_call_operand.hbm [shape: f32[64,64], index: 3, kind: input, shape index: {}]
  %s4 = inlined_call_operand.hbm [shape: f32[1,64], index: 4, kind: input, shape index: {}]
  %s5 = inlined_call_operand.hbm [shape: f32[64,2], index: 5, kind: input, shape index: {}]
  %s6 = inlined_call_operand.<no memory space> [shape: f32[1,1], index: 6, kind: input, shape index: {}]
  %s7 = inlined_call_operand.hbm [shape: f32[2,1,8], index: 7, kind: output, shape index: {0}]
  %s8 = inlined_call_operand.hbm [shape: f32[1,1,64], index: 8, kind: output, shape index: {1}]
  %9 = xla_tuple %s7, %s8
  %s10 = sld [smem:[#allocation0]]
  $region74: #{tpu_custom_call.1} parent=0
    _
  %s12 = ssub.s32 1, %s10
  %s13 = scalar_select 0, %s12, %s10
  %14 = sst [smem:[#allocation3]] %s6
  $region1: #{tpu_custom_call.1} parent=0
    #allocation4 [shape = 'u8[1024]{0}', space=vmem, size = 0x400, scoped, tag = 'input window, operand 0, single buffered']
    #allocation5 [shape = 's32[1]{0}', space=sflag, size = 0x4, scoped, tag = 'scoped memory for tpu_custom_call.1']
    #allocation6 [shape = 's32[1]{0}', space=sflag, size = 0x4, scoped, tag = 'scoped memory for tpu_custom_call.1']
    #allocation7 [shape = 'u8[512]{0}', space=vmem, size = 0x400, scoped, tag = 'input window, operand 1, single buffered']
    #allocation8 [shape = 's32[1]{0}', space=sflag, size = 0x4, scoped, tag = 'scoped memory for tpu_custom_call.1']
    #allocation9 [shape = 'u8[1024]{0}', space=vmem, size = 0x400, scoped, tag = 'input window, operand 2, single buffered']
    #allocation10 [shape = 'u8[32768]{0}', space=vmem, size = 0x8000, scoped, tag = 'input window, operand 3, single buffered']
    #allocation11 [shape = 's32[1]{0}', space=sflag, size = 0x4, scoped, tag = 'scoped memory for tpu_custom_call.1']
    #allocation12 [shape = 'u8[512]{0}', space=vmem, size = 0x400, scoped, tag = 'input window, operand 4, single buffered']
    #allocation13 [shape = 'u8[32768]{0}', space=vmem, size = 0x8000, scoped, tag = 'input window, operand 5, single buffered']
    #allocation14 [shape = 's32[1]{0}', space=sflag, size = 0x4, scoped, tag = 'scoped memory for tpu_custom_call.1']
    #allocation15 [shape = 'u8[1024]{0}', space=vmem, size = 0x400, scoped, tag = 'output window, operand 0, single buffered']
    #allocation16 [shape = 'u8[512]{0}', space=vmem, size = 0x400, scoped, tag = 'output window, operand 1, single buffered']
    #allocation17 [shape = 's32[1]{0}', space=sflag, size = 0x4, scoped, tag = 'scoped memory for tpu_custom_call.1']
    %15 = vsyncpa [#allocation5], 0
    %16 = vsyncpa [#allocation8], 0
    %17 = vsyncpa [#allocation11], 0
    %18 = vsyncpa [#allocation14], 0
    %19 = vsyncpa [#allocation6], 0
    %20 = vsyncpa [#allocation17], 0
    // Predicated region
    $region2: #{tpu_custom_call.1} parent=1 // pred_check
      _
    $region3: #{tpu_custom_call.1} parent=1 // pred_check_branch
      %22 = sbr.rel (0) target = $region5
    $region4: #{tpu_custom_call.1} parent=1 // pred_region
      %s24 = ssub.s32 32, 32
      %25 = vsyncadd [#allocation5], %s24
      %s26 = sshll.u32 [#allocation4], 4
      %s27 = int_to_ptr.vmem [resolvable:$true] %s26
      %32 = dma.hbm_to_vmem [thread:$0]  %s0, 32, %s27, [#allocation5], 16, 16, 1
    $region5: #{tpu_custom_call.1} parent=1 // pred_fallthru
      _
    // Predicated region
    $region6: #{tpu_custom_call.1} parent=1 // pred_check
      _
    $region7: #{tpu_custom_call.1} parent=1 // pred_check_branch
      %34 = sbr.rel (0) target = $region9
    $region8: #{tpu_custom_call.1} parent=1 // pred_region
      %s36 = ssub.s32 16, 16
      %37 = vsyncadd [#allocation8], %s36
      %s39 = sshll.u32 [#allocation7], 4
      %s40 = int_to_ptr.vmem [resolvable:$true] %s39
      %42 = dma.hbm_to_vmem [thread:$0]  %s1, 16, %s40, [#allocation8]
    $region9: #{tpu_custom_call.1} parent=1 // pred_fallthru
      _
    // Predicated region
    $region10: #{tpu_custom_call.1} parent=1 // pred_check
      _
    $region11: #{tpu_custom_call.1} parent=1 // pred_check_branch
      %44 = sbr.rel (0) target = $region13
    $region12: #{tpu_custom_call.1} parent=1 // pred_region
      %s46 = ssub.s32 32, 32
      %47 = vsyncadd [#allocation8], %s46
      %s49 = sshll.u32 [#allocation9], 4
      %s50 = int_to_ptr.vmem [resolvable:$true] %s49
      %52 = dma.hbm_to_vmem [thread:$0]  %s2, 32, %s50, [#allocation8]
    $region13: #{tpu_custom_call.1} parent=1 // pred_fallthru
      _
    // Predicated region
    $region14: #{tpu_custom_call.1} parent=1 // pred_check
      _
    $region15: #{tpu_custom_call.1} parent=1 // pred_check_branch
      %54 = sbr.rel (0) target = $region17
    $region16: #{tpu_custom_call.1} parent=1 // pred_region
      %s56 = ssub.s32 1024, 1024
      %57 = vsyncadd [#allocation11], %s56
      %s58 = sshll.u32 [#allocation10], 4
      %s59 = int_to_ptr.vmem [resolvable:$true] %s58
      %64 = dma.hbm_to_vmem [thread:$0]  %s3, 1024, %s59, [#allocation11], 128, 128, 8
    $region17: #{tpu_custom_call.1} parent=1 // pred_fallthru
      _
    // Predicated region
    $region18: #{tpu_custom_call.1} parent=1 // pred_check
      _
    $region19: #{tpu_custom_call.1} parent=1 // pred_check_branch
      %66 = sbr.rel (0) target = $region21
    $region20: #{tpu_custom_call.1} parent=1 // pred_region
      %s68 = ssub.s32 16, 16
      %69 = vsyncadd [#allocation11], %s68
      %s71 = sshll.u32 [#allocation12], 4
      %s72 = int_to_ptr.vmem [resolvable:$true] %s71
      %74 = dma.hbm_to_vmem [thread:$0]  %s4, 16, %s72, [#allocation11]
    $region21: #{tpu_custom_call.1} parent=1 // pred_fallthru
      _
    // Predicated region
    $region22: #{tpu_custom_call.1} parent=1 // pred_check
      _
    $region23: #{tpu_custom_call.1} parent=1 // pred_check_branch
      %76 = sbr.rel (0) target = $region25
    $region24: #{tpu_custom_call.1} parent=1 // pred_region
      %s78 = ssub.s32 1024, 1024
      %79 = vsyncadd [#allocation14], %s78
      %s80 = sshll.u32 [#allocation13], 4
      %s81 = int_to_ptr.vmem [resolvable:$true] %s80
      %86 = dma.hbm_to_vmem [thread:$0]  %s5, 1024, %s81, [#allocation14], 128, 128, 8
    $region25: #{tpu_custom_call.1} parent=1 // pred_fallthru
      _
    // Predicated region
    $region26: #{tpu_custom_call.1} parent=1 // pred_check
      _
    $region27: #{tpu_custom_call.1} parent=1 // pred_check_branch
      %88 = sbr.rel (0) target = $region29
    $region28: #{tpu_custom_call.1} parent=1 // pred_region
      _
    $region29: #{tpu_custom_call.1} parent=1 // pred_fallthru
      _
    // Predicated region
    $region30: #{tpu_custom_call.1} parent=1 // pred_check
      _
    $region31: #{tpu_custom_call.1} parent=1 // pred_check_branch
      %90 = sbr.rel (0) target = $region33
    $region32: #{tpu_custom_call.1} parent=1 // pred_region
      %91 = dma.done [#allocation5], 32
    $region33: #{tpu_custom_call.1} parent=1 // pred_fallthru
      _
    // Predicated region
    $region34: #{tpu_custom_call.1} parent=1 // pred_check
      _
    $region35: #{tpu_custom_call.1} parent=1 // pred_check_branch
      %93 = sbr.rel (0) target = $region37
    $region36: #{tpu_custom_call.1} parent=1 // pred_region
      %94 = dma.done [#allocation8], 16
    $region37: #{tpu_custom_call.1} parent=1 // pred_fallthru
      _
    // Predicated region
    $region38: #{tpu_custom_call.1} parent=1 // pred_check
      _
    $region39: #{tpu_custom_call.1} parent=1 // pred_check_branch
      %96 = sbr.rel (0) target = $region41
    $region40: #{tpu_custom_call.1} parent=1 // pred_region
      %97 = dma.done [#allocation8], 32
    $region41: #{tpu_custom_call.1} parent=1 // pred_fallthru
      _
    // Predicated region
    $region42: #{tpu_custom_call.1} parent=1 // pred_check
      _
    $region43: #{tpu_custom_call.1} parent=1 // pred_check_branch
      %99 = sbr.rel (0) target = $region45
    $region44: #{tpu_custom_call.1} parent=1 // pred_region
      %100 = dma.done [#allocation11], 1024
    $region45: #{tpu_custom_call.1} parent=1 // pred_fallthru
      _
    // Predicated region
    $region46: #{tpu_custom_call.1} parent=1 // pred_check
      _
    $region47: #{tpu_custom_call.1} parent=1 // pred_check_branch
      %102 = sbr.rel (0) target = $region49
    $region48: #{tpu_custom_call.1} parent=1 // pred_region
      %103 = dma.done [#allocation11], 16
    $region49: #{tpu_custom_call.1} parent=1 // pred_fallthru
      _
    // Predicated region
    $region50: #{tpu_custom_call.1} parent=1 // pred_check
      _
    $region51: #{tpu_custom_call.1} parent=1 // pred_check_branch
      %105 = sbr.rel (0) target = $region53
    $region52: #{tpu_custom_call.1} parent=1 // pred_region
      %106 = dma.done [#allocation14], 1024
    $region53: #{tpu_custom_call.1} parent=1 // pred_fallthru
      _
    %p107 = scmp.eq.s32.totalorder 0, 0
    // Predicated region
    $region54: #{tpu_custom_call.1} parent=1 // pred_check
      %p108 = pneg %p107
    $region55: #{tpu_custom_call.1} parent=1 // pred_check_branch
      %110 = sbr.rel (%p108) target = $region57
    $region56: #{tpu_custom_call.1} parent=1 // pred_region
      %v111 = vld [vmem:[#allocation7] sm:$0x1]
      %vm112 = vcmask 516096
      %113 = vst.msk [vmem:[#allocation16] sm:$0x1] %vm112, %v111
    $region57: #{tpu_custom_call.1} parent=1 // pred_fallthru
      _
    %v114 = vld [vmem:[#allocation10] sm:$0xff]
    %v115 = vld [vmem:[#allocation10 + $0x8] sm:$0xff]
    %v116 = vld [vmem:[#allocation10 + $0x10] sm:$0xff]
    %v117 = vld [vmem:[#allocation10 + $0x18] sm:$0xff]
    %v118 = vld [vmem:[#allocation10 + $0x20] sm:$0xff]
    %v119 = vld [vmem:[#allocation10 + $0x28] sm:$0xff]
    %v120 = vld [vmem:[#allocation10 + $0x30] sm:$0xff]
    %v121 = vld [vmem:[#allocation10 + $0x38] sm:$0xff]
    %v122 = vld [vmem:[#allocation4] sm:$0x1]
    %v123 = vld [vmem:[#allocation4 + $0x1] sm:$0x1]
    %v126 = vcombine.low %v122, %v123
    %v128 = vunpack.c.l.s4 1966171168
    %v129 = vunpack.c.0.s8 %v128
    %v130 = vlaneseq
    %v131 = vshrl.u32 %v130, 7
    %v132 = vsub.s32 %v129, %v131
    %v133 = vrot.slane %v126, %v132
    %v135 = vunpack.c.l.s4 1966171168
    %v136 = vunpack.c.0.s8 %v135
    %v137 = vlaneseq
    %v138 = vshrl.u32 %v137, 7
    %v139 = vsub.s32 %v136, %v138
    %v140 = vrot.slane %v133, %v139
    %142 = vxpose.xlu0.b32.start [1/16] %v140, 128
    %143 = vxpose.xlu0.b32.cont [2/16] 0.0, 128
    %144 = vxpose.xlu0.b32.cont [3/16] 0.0, 128
    %145 = vxpose.xlu0.b32.cont [4/16] 0.0, 128
    %146 = vxpose.xlu0.b32.cont [5/16] 0.0, 128
    %147 = vxpose.xlu0.b32.cont [6/16] 0.0, 128
    %148 = vxpose.xlu0.b32.cont [7/16] 0.0, 128
    %149 = vxpose.xlu0.b32.cont [8/16] 0.0, 128
    %150 = vxpose.xlu0.b32.cont [9/16] 0.0, 128
    %151 = vxpose.xlu0.b32.cont [10/16] 0.0, 128
    %152 = vxpose.xlu0.b32.cont [11/16] 0.0, 128
    %153 = vxpose.xlu0.b32.cont [12/16] 0.0, 128
    %154 = vxpose.xlu0.b32.cont [13/16] 0.0, 128
    %155 = vxpose.xlu0.b32.cont [14/16] 0.0, 128
    %156 = vxpose.xlu0.b32.cont [15/16] 0.0, 128
    %157 = vxpose.xlu0.b32.end [16/16] 0.0, 128
    %v158 = vpop.trf.xlu0
    %v159 = vpop.trf.xlu0
    %v160 = vpop.trf.xlu0
    %v161 = vpop.trf.xlu0
    %v162 = vpop.trf.xlu0
    %v163 = vpop.trf.xlu0
    %v164 = vpop.trf.xlu0
    %v165 = vpop.trf.xlu0
    %v166 = vpop.trf.xlu0
    %v167 = vpop.trf.xlu0
    %v168 = vpop.trf.xlu0
    %v169 = vpop.trf.xlu0
    %v170 = vpop.trf.xlu0
    %v171 = vpop.trf.xlu0
    %v172 = vpop.trf.xlu0
    %v173 = vpop.trf.xlu0
    %v174 = vld [vmem:[#allocation9] sm:$0x3]
    %v175 = vld [vmem:[#allocation12] sm:$0x1]
    %v177 = vlaneseq
    %v178 = vshrl.u32 %v177, 7
    %v179 = vsub.s32 0, %v178
    %v180 = vrot.slane %v175, %v179
    %vm182 = vcmask 15360
    %v184 = vsel %vm182, %v158, 0
    %vm186 = vcmask 1041408
    %v188 = vsel %vm186, %v174, 0
    %190 = vmatprep.subr.mxu0 0.0
    %191 = vmatpush1.msra.mxu0 %v188
    %192 = vmatprep.subr.mxu0 0.0
    %193 = vmatpush1.msra.mxu0 0.0
    %194 = vmatprep.subr.mxu0 0.0
    %195 = vmatpush1.msra.mxu0 0.0
    %196 = vmatprep.subr.mxu0 0.0
    %197 = vmatpush1.msra.mxu0 0.0
    %198 = vmatprep.subr.mxu0 0.0
    %199 = vmatpush1.msra.mxu0 0.0
    %200 = vmatprep.subr.mxu0 0.0
    %201 = vmatpush1.msra.mxu0 0.0
    %202 = vmatprep.subr.mxu0 0.0
    %203 = vmatpush1.msra.mxu0 0.0
    %204 = vmatprep.subr.mxu0 0.0
    %205 = vmatpush1.msra.mxu0 0.0
    %206 = vmatprep.subr.mxu0 0.0
    %207 = vmatpush1.msra.mxu0 0.0
    %208 = vmatprep.subr.mxu0 0.0
    %209 = vmatpush1.msra.mxu0 0.0
    %210 = vmatprep.subr.mxu0 0.0
    %211 = vmatpush1.msra.mxu0 0.0
    %212 = vmatprep.subr.mxu0 0.0
    %213 = vmatpush1.msra.mxu0 0.0
    %214 = vmatprep.subr.mxu0 0.0
    %215 = vmatpush1.msra.mxu0 0.0
    %216 = vmatprep.subr.mxu0 0.0
    %217 = vmatpush1.msra.mxu0 0.0
    %218 = vmatprep.subr.mxu0 0.0
    %219 = vmatpush1.msra.mxu0 0.0
    %220 = vmatprep.subr.mxu0 0.0
    %221 = vmatpush1.msra.mxu0 0.0
    %222 = vmatprep.subr.mxu0 0.0
    %223 = vmatpush1.msra.mxu0 0.0
    %224 = vmatprep.subr.mxu0 0.0
    %225 = vmatpush1.msra.mxu0 0.0
    %226 = vmatprep.subr.mxu0 0.0
    %227 = vmatpush1.msra.mxu0 0.0
    %228 = vmatprep.subr.mxu0 0.0
    %229 = vmatpush1.msra.mxu0 0.0
    %230 = vmatprep.subr.mxu0 0.0
    %231 = vmatpush1.msra.mxu0 0.0
    %232 = vmatprep.subr.mxu0 0.0
    %233 = vmatpush1.msra.mxu0 0.0
    %234 = vmatprep.subr.mxu0 0.0
    %235 = vmatpush1.msra.mxu0 0.0
    %236 = vmatprep.subr.mxu0 0.0
    %237 = vmatpush1.msra.mxu0 0.0
    %238 = vmatprep.subr.mxu0 0.0
    %239 = vmatpush1.msra.mxu0 0.0
    %240 = vmatprep.subr.mxu0 0.0
    %241 = vmatpush1.msra.mxu0 0.0
    %242 = vmatprep.subr.mxu0 0.0
    %243 = vmatpush1.msra.mxu0 0.0
    %244 = vmatprep.subr.mxu0 0.0
    %245 = vmatpush1.msra.mxu0 0.0
    %246 = vmatprep.subr.mxu0 0.0
    %247 = vmatpush1.msra.mxu0 0.0
    %248 = vmatprep.subr.mxu0 0.0
    %249 = vmatpush1.msra.mxu0 0.0
    %250 = vmatprep.subr.mxu0 0.0
    %251 = vmatpush1.msra.mxu0 0.0
    %252 = vmatprep.subr.mxu0 0.0
    %253 = vmatpush1.msra.mxu0 0.0
    %254 = vmatprep.mubr.f32.mxu0 0.0
    %255 = vmatmul.mubr.f32.gmra.mrb[0].mxu0 %v184
    %v256 = vpop.f32.mrb[0].mxu0
    %v257 = vadd.f32 %v180, %v256
    %v258 = vpop.f32.mrb[0].mxu0
    %259 = vdwg.mxu0
    %vm260 = vcmask 523264
    %261 = vst.msk [vmem:[#allocation2] sm:$0xff] %vm260, %v257
    %v262 = vld [vmem:[#allocation16] sm:$0x1]
    %v263 = vld [vmem:[#allocation2] sm:$0x1]
    %v265 = vsel %vm260, %v262, 0
    %267 = vmatprep.subr.mxu0 0.0
    %268 = vmatpush1.msra.mxu0 %v114
    %269 = vmatprep.subr.mxu0 0.0
    %270 = vmatpush1.msra.mxu0 %v115
    %271 = vmatprep.subr.mxu0 0.0
    %272 = vmatpush1.msra.mxu0 %v116
    %273 = vmatprep.subr.mxu0 0.0
    %274 = vmatpush1.msra.mxu0 %v117
    %275 = vmatprep.subr.mxu0 0.0
    %276 = vmatpush1.msra.mxu0 %v118
    %277 = vmatprep.subr.mxu0 0.0
    %278 = vmatpush1.msra.mxu0 %v119
    %279 = vmatprep.subr.mxu0 0.0
    %280 = vmatpush1.msra.mxu0 %v120
    %281 = vmatprep.subr.mxu0 0.0
    %282 = vmatpush1.msra.mxu0 %v121
    %283 = vmatprep.subr.mxu0 0.0
    %284 = vmatpush1.msra.mxu0 0.0
    %285 = vmatprep.subr.mxu0 0.0
    %286 = vmatpush1.msra.mxu0 0.0
    %287 = vmatprep.subr.mxu0 0.0
    %288 = vmatpush1.msra.mxu0 0.0
    %289 = vmatprep.subr.mxu0 0.0
    %290 = vmatpush1.msra.mxu0 0.0
    %291 = vmatprep.subr.mxu0 0.0
    %292 = vmatpush1.msra.mxu0 0.0
    %293 = vmatprep.subr.mxu0 0.0
    %294 = vmatpush1.msra.mxu0 0.0
    %295 = vmatprep.subr.mxu0 0.0
    %296 = vmatpush1.msra.mxu0 0.0
    %297 = vmatprep.subr.mxu0 0.0
    %298 = vmatpush1.msra.mxu0 0.0
    %299 = vmatprep.subr.mxu0 0.0
    %300 = vmatpush1.msra.mxu0 0.0
    %301 = vmatprep.subr.mxu0 0.0
    %302 = vmatpush1.msra.mxu0 0.0
    %303 = vmatprep.subr.mxu0 0.0
    %304 = vmatpush1.msra.mxu0 0.0
    %305 = vmatprep.subr.mxu0 0.0
    %306 = vmatpush1.msra.mxu0 0.0
    %307 = vmatprep.subr.mxu0 0.0
    %308 = vmatpush1.msra.mxu0 0.0
    %309 = vmatprep.subr.mxu0 0.0
    %310 = vmatpush1.msra.mxu0 0.0
    %311 = vmatprep.subr.mxu0 0.0
    %312 = vmatpush1.msra.mxu0 0.0
    %313 = vmatprep.subr.mxu0 0.0
    %314 = vmatpush1.msra.mxu0 0.0
    %315 = vmatprep.subr.mxu0 0.0
    %316 = vmatpush1.msra.mxu0 0.0
    %317 = vmatprep.subr.mxu0 0.0
    %318 = vmatpush1.msra.mxu0 0.0
    %319 = vmatprep.subr.mxu0 0.0
    %320 = vmatpush1.msra.mxu0 0.0
    %321 = vmatprep.subr.mxu0 0.0
    %322 = vmatpush1.msra.mxu0 0.0
    %323 = vmatprep.subr.mxu0 0.0
    %324 = vmatpush1.msra.mxu0 0.0
    %325 = vmatprep.subr.mxu0 0.0
    %326 = vmatpush1.msra.mxu0 0.0
    %327 = vmatprep.subr.mxu0 0.0
    %328 = vmatpush1.msra.mxu0 0.0
    %329 = vmatprep.subr.mxu0 0.0
    %330 = vmatpush1.msra.mxu0 0.0
    %331 = vmatprep.mubr.f32.mxu0 0.0
    %332 = vmatmul.mubr.f32.gmra.mrb[0].mxu0 %v265
    %v333 = vpop.f32.mrb[0].mxu0
    %v334 = vadd.f32 0.0, %v333
    %v335 = vpop.f32.mrb[0].mxu0
    %336 = vdwg.mxu0
    %v337 = vadd.f32 %v263, %v334
    %v338 = vtanh.pop %v337
    %vm339 = vcmask 516096
    %340 = vst.msk [vmem:[#allocation2] sm:$0x1] %vm339, %v338
    %v341 = vld [vmem:[#allocation2 + $0x1] sm:$0x1]
    %v343 = vsel %vm260, %v338, 0
    %345 = vmatprep.subr.mxu0 0.0
    %346 = vmatpush1.msra.mxu0 %v114
    %347 = vmatprep.subr.mxu0 0.0
    %348 = vmatpush1.msra.mxu0 %v115
    %349 = vmatprep.subr.mxu0 0.0
    %350 = vmatpush1.msra.mxu0 %v116
    %351 = vmatprep.subr.mxu0 0.0
    %352 = vmatpush1.msra.mxu0 %v117
    %353 = vmatprep.subr.mxu0 0.0
    %354 = vmatpush1.msra.mxu0 %v118
    %355 = vmatprep.subr.mxu0 0.0
    %356 = vmatpush1.msra.mxu0 %v119
    %357 = vmatprep.subr.mxu0 0.0
    %358 = vmatpush1.msra.mxu0 %v120
    %359 = vmatprep.subr.mxu0 0.0
    %360 = vmatpush1.msra.mxu0 %v121
    %361 = vmatprep.subr.mxu0 0.0
    %362 = vmatpush1.msra.mxu0 0.0
    %363 = vmatprep.subr.mxu0 0.0
    %364 = vmatpush1.msra.mxu0 0.0
    %365 = vmatprep.subr.mxu0 0.0
    %366 = vmatpush1.msra.mxu0 0.0
    %367 = vmatprep.subr.mxu0 0.0
    %368 = vmatpush1.msra.mxu0 0.0
    %369 = vmatprep.subr.mxu0 0.0
    %370 = vmatpush1.msra.mxu0 0.0
    %371 = vmatprep.subr.mxu0 0.0
    %372 = vmatpush1.msra.mxu0 0.0
    %373 = vmatprep.subr.mxu0 0.0
    %374 = vmatpush1.msra.mxu0 0.0
    %375 = vmatprep.subr.mxu0 0.0
    %376 = vmatpush1.msra.mxu0 0.0
    %377 = vmatprep.subr.mxu0 0.0
    %378 = vmatpush1.msra.mxu0 0.0
    %379 = vmatprep.subr.mxu0 0.0
    %380 = vmatpush1.msra.mxu0 0.0
    %381 = vmatprep.subr.mxu0 0.0
    %382 = vmatpush1.msra.mxu0 0.0
    %383 = vmatprep.subr.mxu0 0.0
    %384 = vmatpush1.msra.mxu0 0.0
    %385 = vmatprep.subr.mxu0 0.0
    %386 = vmatpush1.msra.mxu0 0.0
    %387 = vmatprep.subr.mxu0 0.0
    %388 = vmatpush1.msra.mxu0 0.0
    %389 = vmatprep.subr.mxu0 0.0
    %390 = vmatpush1.msra.mxu0 0.0
    %391 = vmatprep.subr.mxu0 0.0
    %392 = vmatpush1.msra.mxu0 0.0
    %393 = vmatprep.subr.mxu0 0.0
    %394 = vmatpush1.msra.mxu0 0.0
    %395 = vmatprep.subr.mxu0 0.0
    %396 = vmatpush1.msra.mxu0 0.0
    %397 = vmatprep.subr.mxu0 0.0
    %398 = vmatpush1.msra.mxu0 0.0
    %399 = vmatprep.subr.mxu0 0.0
    %400 = vmatpush1.msra.mxu0 0.0
    %401 = vmatprep.subr.mxu0 0.0
    %402 = vmatpush1.msra.mxu0 0.0
    %403 = vmatprep.subr.mxu0 0.0
    %404 = vmatpush1.msra.mxu0 0.0
    %405 = vmatprep.subr.mxu0 0.0
    %406 = vmatpush1.msra.mxu0 0.0
    %407 = vmatprep.subr.mxu0 0.0
    %408 = vmatpush1.msra.mxu0 0.0
    %409 = vmatprep.mubr.f32.mxu0 0.0
    %410 = vmatmul.mubr.f32.gmra.mrb[0].mxu0 %v343
    %v411 = vpop.f32.mrb[0].mxu0
    %v412 = vadd.f32 0.0, %v411
    %v413 = vpop.f32.mrb[0].mxu0
    %414 = vdwg.mxu0
    %v415 = vadd.f32 %v341, %v412
    %v416 = vtanh.pop %v415
    %417 = vst.msk [vmem:[#allocation2 + $0x1] sm:$0x1] %vm339, %v416
    %v418 = vld [vmem:[#allocation2 + $0x2] sm:$0x1]
    %v420 = vsel %vm260, %v416, 0
    %422 = vmatprep.subr.mxu0 0.0
    %423 = vmatpush1.msra.mxu0 %v114
    %424 = vmatprep.subr.mxu0 0.0
    %425 = vmatpush1.msra.mxu0 %v115
    %426 = vmatprep.subr.mxu0 0.0
    %427 = vmatpush1.msra.mxu0 %v116
    %428 = vmatprep.subr.mxu0 0.0
    %429 = vmatpush1.msra.mxu0 %v117
    %430 = vmatprep.subr.mxu0 0.0
    %431 = vmatpush1.msra.mxu0 %v118
    %432 = vmatprep.subr.mxu0 0.0
    %433 = vmatpush1.msra.mxu0 %v119
    %434 = vmatprep.subr.mxu0 0.0
    %435 = vmatpush1.msra.mxu0 %v120
    %436 = vmatprep.subr.mxu0 0.0
    %437 = vmatpush1.msra.mxu0 %v121
    %438 = vmatprep.subr.mxu0 0.0
    %439 = vmatpush1.msra.mxu0 0.0
    %440 = vmatprep.subr.mxu0 0.0
    %441 = vmatpush1.msra.mxu0 0.0
    %442 = vmatprep.subr.mxu0 0.0
    %443 = vmatpush1.msra.mxu0 0.0
    %444 = vmatprep.subr.mxu0 0.0
    %445 = vmatpush1.msra.mxu0 0.0
    %446 = vmatprep.subr.mxu0 0.0
    %447 = vmatpush1.msra.mxu0 0.0
    %448 = vmatprep.subr.mxu0 0.0
    %449 = vmatpush1.msra.mxu0 0.0
    %450 = vmatprep.subr.mxu0 0.0
    %451 = vmatpush1.msra.mxu0 0.0
    %452 = vmatprep.subr.mxu0 0.0
    %453 = vmatpush1.msra.mxu0 0.0
    %454 = vmatprep.subr.mxu0 0.0
    %455 = vmatpush1.msra.mxu0 0.0
    %456 = vmatprep.subr.mxu0 0.0
    %457 = vmatpush1.msra.mxu0 0.0
    %458 = vmatprep.subr.mxu0 0.0
    %459 = vmatpush1.msra.mxu0 0.0
    %460 = vmatprep.subr.mxu0 0.0
    %461 = vmatpush1.msra.mxu0 0.0
    %462 = vmatprep.subr.mxu0 0.0
    %463 = vmatpush1.msra.mxu0 0.0
    %464 = vmatprep.subr.mxu0 0.0
    %465 = vmatpush1.msra.mxu0 0.0
    %466 = vmatprep.subr.mxu0 0.0
    %467 = vmatpush1.msra.mxu0 0.0
    %468 = vmatprep.subr.mxu0 0.0
    %469 = vmatpush1.msra.mxu0 0.0
    %470 = vmatprep.subr.mxu0 0.0
    %471 = vmatpush1.msra.mxu0 0.0
    %472 = vmatprep.subr.mxu0 0.0
    %473 = vmatpush1.msra.mxu0 0.0
    %474 = vmatprep.subr.mxu0 0.0
    %475 = vmatpush1.msra.mxu0 0.0
    %476 = vmatprep.subr.mxu0 0.0
    %477 = vmatpush1.msra.mxu0 0.0
    %478 = vmatprep.subr.mxu0 0.0
    %479 = vmatpush1.msra.mxu0 0.0
    %480 = vmatprep.subr.mxu0 0.0
    %481 = vmatpush1.msra.mxu0 0.0
    %482 = vmatprep.subr.mxu0 0.0
    %483 = vmatpush1.msra.mxu0 0.0
    %484 = vmatprep.subr.mxu0 0.0
    %485 = vmatpush1.msra.mxu0 0.0
    %486 = vmatprep.mubr.f32.mxu0 0.0
    %487 = vmatmul.mubr.f32.gmra.mrb[0].mxu0 %v420
    %v488 = vpop.f32.mrb[0].mxu0
    %v489 = vadd.f32 0.0, %v488
    %v490 = vpop.f32.mrb[0].mxu0
    %491 = vdwg.mxu0
    %v492 = vadd.f32 %v418, %v489
    %v493 = vtanh.pop %v492
    %494 = vst.msk [vmem:[#allocation2 + $0x2] sm:$0x1] %vm339, %v493
    %v495 = vld [vmem:[#allocation2 + $0x3] sm:$0x1]
    %v497 = vsel %vm260, %v493, 0
    %499 = vmatprep.subr.mxu0 0.0
    %500 = vmatpush1.msra.mxu0 %v114
    %501 = vmatprep.subr.mxu0 0.0
    %502 = vmatpush1.msra.mxu0 %v115
    %503 = vmatprep.subr.mxu0 0.0
    %504 = vmatpush1.msra.mxu0 %v116
    %505 = vmatprep.subr.mxu0 0.0
    %506 = vmatpush1.msra.mxu0 %v117
    %507 = vmatprep.subr.mxu0 0.0
    %508 = vmatpush1.msra.mxu0 %v118
    %509 = vmatprep.subr.mxu0 0.0
    %510 = vmatpush1.msra.mxu0 %v119
    %511 = vmatprep.subr.mxu0 0.0
    %512 = vmatpush1.msra.mxu0 %v120
    %513 = vmatprep.subr.mxu0 0.0
    %514 = vmatpush1.msra.mxu0 %v121
    %515 = vmatprep.subr.mxu0 0.0
    %516 = vmatpush1.msra.mxu0 0.0
    %517 = vmatprep.subr.mxu0 0.0
    %518 = vmatpush1.msra.mxu0 0.0
    %519 = vmatprep.subr.mxu0 0.0
    %520 = vmatpush1.msra.mxu0 0.0
    %521 = vmatprep.subr.mxu0 0.0
    %522 = vmatpush1.msra.mxu0 0.0
    %523 = vmatprep.subr.mxu0 0.0
    %524 = vmatpush1.msra.mxu0 0.0
    %525 = vmatprep.subr.mxu0 0.0
    %526 = vmatpush1.msra.mxu0 0.0
    %527 = vmatprep.subr.mxu0 0.0
    %528 = vmatpush1.msra.mxu0 0.0
    %529 = vmatprep.subr.mxu0 0.0
    %530 = vmatpush1.msra.mxu0 0.0
    %531 = vmatprep.subr.mxu0 0.0
    %532 = vmatpush1.msra.mxu0 0.0
    %533 = vmatprep.subr.mxu0 0.0
    %534 = vmatpush1.msra.mxu0 0.0
    %535 = vmatprep.subr.mxu0 0.0
    %536 = vmatpush1.msra.mxu0 0.0
    %537 = vmatprep.subr.mxu0 0.0
    %538 = vmatpush1.msra.mxu0 0.0
    %539 = vmatprep.subr.mxu0 0.0
    %540 = vmatpush1.msra.mxu0 0.0
    %541 = vmatprep.subr.mxu0 0.0
    %542 = vmatpush1.msra.mxu0 0.0
    %543 = vmatprep.subr.mxu0 0.0
    %544 = vmatpush1.msra.mxu0 0.0
    %545 = vmatprep.subr.mxu0 0.0
    %546 = vmatpush1.msra.mxu0 0.0
    %547 = vmatprep.subr.mxu0 0.0
    %548 = vmatpush1.msra.mxu0 0.0
    %549 = vmatprep.subr.mxu0 0.0
    %550 = vmatpush1.msra.mxu0 0.0
    %551 = vmatprep.subr.mxu0 0.0
    %552 = vmatpush1.msra.mxu0 0.0
    %553 = vmatprep.subr.mxu0 0.0
    %554 = vmatpush1.msra.mxu0 0.0
    %555 = vmatprep.subr.mxu0 0.0
    %556 = vmatpush1.msra.mxu0 0.0
    %557 = vmatprep.subr.mxu0 0.0
    %558 = vmatpush1.msra.mxu0 0.0
    %559 = vmatprep.subr.mxu0 0.0
    %560 = vmatpush1.msra.mxu0 0.0
    %561 = vmatprep.subr.mxu0 0.0
    %562 = vmatpush1.msra.mxu0 0.0
    %563 = vmatprep.mubr.f32.mxu0 0.0
    %564 = vmatmul.mubr.f32.gmra.mrb[0].mxu0 %v497
    %v565 = vpop.f32.mrb[0].mxu0
    %v566 = vadd.f32 0.0, %v565
    %v567 = vpop.f32.mrb[0].mxu0
    %568 = vdwg.mxu0
    %v569 = vadd.f32 %v495, %v566
    %v570 = vtanh.pop %v569
    %571 = vst.msk [vmem:[#allocation2 + $0x3] sm:$0x1] %vm339, %v570
    %v572 = vld [vmem:[#allocation2 + $0x4] sm:$0x1]
    %v574 = vsel %vm260, %v570, 0
    %576 = vmatprep.subr.mxu0 0.0
    %577 = vmatpush1.msra.mxu0 %v114
    %578 = vmatprep.subr.mxu0 0.0
    %579 = vmatpush1.msra.mxu0 %v115
    %580 = vmatprep.subr.mxu0 0.0
    %581 = vmatpush1.msra.mxu0 %v116
    %582 = vmatprep.subr.mxu0 0.0
    %583 = vmatpush1.msra.mxu0 %v117
    %584 = vmatprep.subr.mxu0 0.0
    %585 = vmatpush1.msra.mxu0 %v118
    %586 = vmatprep.subr.mxu0 0.0
    %587 = vmatpush1.msra.mxu0 %v119
    %588 = vmatprep.subr.mxu0 0.0
    %589 = vmatpush1.msra.mxu0 %v120
    %590 = vmatprep.subr.mxu0 0.0
    %591 = vmatpush1.msra.mxu0 %v121
    %592 = vmatprep.subr.mxu0 0.0
    %593 = vmatpush1.msra.mxu0 0.0
    %594 = vmatprep.subr.mxu0 0.0
    %595 = vmatpush1.msra.mxu0 0.0
    %596 = vmatprep.subr.mxu0 0.0
    %597 = vmatpush1.msra.mxu0 0.0
    %598 = vmatprep.subr.mxu0 0.0
    %599 = vmatpush1.msra.mxu0 0.0
    %600 = vmatprep.subr.mxu0 0.0
    %601 = vmatpush1.msra.mxu0 0.0
    %602 = vmatprep.subr.mxu0 0.0
    %603 = vmatpush1.msra.mxu0 0.0
    %604 = vmatprep.subr.mxu0 0.0
    %605 = vmatpush1.msra.mxu0 0.0
    %606 = vmatprep.subr.mxu0 0.0
    %607 = vmatpush1.msra.mxu0 0.0
    %608 = vmatprep.subr.mxu0 0.0
    %609 = vmatpush1.msra.mxu0 0.0
    %610 = vmatprep.subr.mxu0 0.0
    %611 = vmatpush1.msra.mxu0 0.0
    %612 = vmatprep.subr.mxu0 0.0
    %613 = vmatpush1.msra.mxu0 0.0
    %614 = vmatprep.subr.mxu0 0.0
    %615 = vmatpush1.msra.mxu0 0.0
    %616 = vmatprep.subr.mxu0 0.0
    %617 = vmatpush1.msra.mxu0 0.0
    %618 = vmatprep.subr.mxu0 0.0
    %619 = vmatpush1.msra.mxu0 0.0
    %620 = vmatprep.subr.mxu0 0.0
    %621 = vmatpush1.msra.mxu0 0.0
    %622 = vmatprep.subr.mxu0 0.0
    %623 = vmatpush1.msra.mxu0 0.0
    %624 = vmatprep.subr.mxu0 0.0
    %625 = vmatpush1.msra.mxu0 0.0
    %626 = vmatprep.subr.mxu0 0.0
    %627 = vmatpush1.msra.mxu0 0.0
    %628 = vmatprep.subr.mxu0 0.0
    %629 = vmatpush1.msra.mxu0 0.0
    %630 = vmatprep.subr.mxu0 0.0
    %631 = vmatpush1.msra.mxu0 0.0
    %632 = vmatprep.subr.mxu0 0.0
    %633 = vmatpush1.msra.mxu0 0.0
    %634 = vmatprep.subr.mxu0 0.0
    %635 = vmatpush1.msra.mxu0 0.0
    %636 = vmatprep.subr.mxu0 0.0
    %637 = vmatpush1.msra.mxu0 0.0
    %638 = vmatprep.subr.mxu0 0.0
    %639 = vmatpush1.msra.mxu0 0.0
    %640 = vmatprep.mubr.f32.mxu0 0.0
    %641 = vmatmul.mubr.f32.gmra.mrb[0].mxu0 %v574
    %v642 = vpop.f32.mrb[0].mxu0
    %v643 = vadd.f32 0.0, %v642
    %v644 = vpop.f32.mrb[0].mxu0
    %645 = vdwg.mxu0
    %v646 = vadd.f32 %v572, %v643
    %v647 = vtanh.pop %v646
    %648 = vst.msk [vmem:[#allocation2 + $0x4] sm:$0x1] %vm339, %v647
    %v649 = vld [vmem:[#allocation2 + $0x5] sm:$0x1]
    %v651 = vsel %vm260, %v647, 0
    %653 = vmatprep.subr.mxu0 0.0
    %654 = vmatpush1.msra.mxu0 %v114
    %655 = vmatprep.subr.mxu0 0.0
    %656 = vmatpush1.msra.mxu0 %v115
    %657 = vmatprep.subr.mxu0 0.0
    %658 = vmatpush1.msra.mxu0 %v116
    %659 = vmatprep.subr.mxu0 0.0
    %660 = vmatpush1.msra.mxu0 %v117
    %661 = vmatprep.subr.mxu0 0.0
    %662 = vmatpush1.msra.mxu0 %v118
    %663 = vmatprep.subr.mxu0 0.0
    %664 = vmatpush1.msra.mxu0 %v119
    %665 = vmatprep.subr.mxu0 0.0
    %666 = vmatpush1.msra.mxu0 %v120
    %667 = vmatprep.subr.mxu0 0.0
    %668 = vmatpush1.msra.mxu0 %v121
    %669 = vmatprep.subr.mxu0 0.0
    %670 = vmatpush1.msra.mxu0 0.0
    %671 = vmatprep.subr.mxu0 0.0
    %672 = vmatpush1.msra.mxu0 0.0
    %673 = vmatprep.subr.mxu0 0.0
    %674 = vmatpush1.msra.mxu0 0.0
    %675 = vmatprep.subr.mxu0 0.0
    %676 = vmatpush1.msra.mxu0 0.0
    %677 = vmatprep.subr.mxu0 0.0
    %678 = vmatpush1.msra.mxu0 0.0
    %679 = vmatprep.subr.mxu0 0.0
    %680 = vmatpush1.msra.mxu0 0.0
    %681 = vmatprep.subr.mxu0 0.0
    %682 = vmatpush1.msra.mxu0 0.0
    %683 = vmatprep.subr.mxu0 0.0
    %684 = vmatpush1.msra.mxu0 0.0
    %685 = vmatprep.subr.mxu0 0.0
    %686 = vmatpush1.msra.mxu0 0.0
    %687 = vmatprep.subr.mxu0 0.0
    %688 = vmatpush1.msra.mxu0 0.0
    %689 = vmatprep.subr.mxu0 0.0
    %690 = vmatpush1.msra.mxu0 0.0
    %691 = vmatprep.subr.mxu0 0.0
    %692 = vmatpush1.msra.mxu0 0.0
    %693 = vmatprep.subr.mxu0 0.0
    %694 = vmatpush1.msra.mxu0 0.0
    %695 = vmatprep.subr.mxu0 0.0
    %696 = vmatpush1.msra.mxu0 0.0
    %697 = vmatprep.subr.mxu0 0.0
    %698 = vmatpush1.msra.mxu0 0.0
    %699 = vmatprep.subr.mxu0 0.0
    %700 = vmatpush1.msra.mxu0 0.0
    %701 = vmatprep.subr.mxu0 0.0
    %702 = vmatpush1.msra.mxu0 0.0
    %703 = vmatprep.subr.mxu0 0.0
    %704 = vmatpush1.msra.mxu0 0.0
    %705 = vmatprep.subr.mxu0 0.0
    %706 = vmatpush1.msra.mxu0 0.0
    %707 = vmatprep.subr.mxu0 0.0
    %708 = vmatpush1.msra.mxu0 0.0
    %709 = vmatprep.subr.mxu0 0.0
    %710 = vmatpush1.msra.mxu0 0.0
    %711 = vmatprep.subr.mxu0 0.0
    %712 = vmatpush1.msra.mxu0 0.0
    %713 = vmatprep.subr.mxu0 0.0
    %714 = vmatpush1.msra.mxu0 0.0
    %715 = vmatprep.subr.mxu0 0.0
    %716 = vmatpush1.msra.mxu0 0.0
    %717 = vmatprep.mubr.f32.mxu0 0.0
    %718 = vmatmul.mubr.f32.gmra.mrb[0].mxu0 %v651
    %v719 = vpop.f32.mrb[0].mxu0
    %v720 = vadd.f32 0.0, %v719
    %v721 = vpop.f32.mrb[0].mxu0
    %722 = vdwg.mxu0
    %v723 = vadd.f32 %v649, %v720
    %v724 = vtanh.pop %v723
    %725 = vst.msk [vmem:[#allocation2 + $0x5] sm:$0x1] %vm339, %v724
    %v726 = vld [vmem:[#allocation2 + $0x6] sm:$0x1]
    %v728 = vsel %vm260, %v724, 0
    %730 = vmatprep.subr.mxu0 0.0
    %731 = vmatpush1.msra.mxu0 %v114
    %732 = vmatprep.subr.mxu0 0.0
    %733 = vmatpush1.msra.mxu0 %v115
    %734 = vmatprep.subr.mxu0 0.0
    %735 = vmatpush1.msra.mxu0 %v116
    %736 = vmatprep.subr.mxu0 0.0
    %737 = vmatpush1.msra.mxu0 %v117
    %738 = vmatprep.subr.mxu0 0.0
    %739 = vmatpush1.msra.mxu0 %v118
    %740 = vmatprep.subr.mxu0 0.0
    %741 = vmatpush1.msra.mxu0 %v119
    %742 = vmatprep.subr.mxu0 0.0
    %743 = vmatpush1.msra.mxu0 %v120
    %744 = vmatprep.subr.mxu0 0.0
    %745 = vmatpush1.msra.mxu0 %v121
    %746 = vmatprep.subr.mxu0 0.0
    %747 = vmatpush1.msra.mxu0 0.0
    %748 = vmatprep.subr.mxu0 0.0
    %749 = vmatpush1.msra.mxu0 0.0
    %750 = vmatprep.subr.mxu0 0.0
    %751 = vmatpush1.msra.mxu0 0.0
    %752 = vmatprep.subr.mxu0 0.0
    %753 = vmatpush1.msra.mxu0 0.0
    %754 = vmatprep.subr.mxu0 0.0
    %755 = vmatpush1.msra.mxu0 0.0
    %756 = vmatprep.subr.mxu0 0.0
    %757 = vmatpush1.msra.mxu0 0.0
    %758 = vmatprep.subr.mxu0 0.0
    %759 = vmatpush1.msra.mxu0 0.0
    %760 = vmatprep.subr.mxu0 0.0
    %761 = vmatpush1.msra.mxu0 0.0
    %762 = vmatprep.subr.mxu0 0.0
    %763 = vmatpush1.msra.mxu0 0.0
    %764 = vmatprep.subr.mxu0 0.0
    %765 = vmatpush1.msra.mxu0 0.0
    %766 = vmatprep.subr.mxu0 0.0
    %767 = vmatpush1.msra.mxu0 0.0
    %768 = vmatprep.subr.mxu0 0.0
    %769 = vmatpush1.msra.mxu0 0.0
    %770 = vmatprep.subr.mxu0 0.0
    %771 = vmatpush1.msra.mxu0 0.0
    %772 = vmatprep.subr.mxu0 0.0
    %773 = vmatpush1.msra.mxu0 0.0
    %774 = vmatprep.subr.mxu0 0.0
    %775 = vmatpush1.msra.mxu0 0.0
    %776 = vmatprep.subr.mxu0 0.0
    %777 = vmatpush1.msra.mxu0 0.0
    %778 = vmatprep.subr.mxu0 0.0
    %779 = vmatpush1.msra.mxu0 0.0
    %780 = vmatprep.subr.mxu0 0.0
    %781 = vmatpush1.msra.mxu0 0.0
    %782 = vmatprep.subr.mxu0 0.0
    %783 = vmatpush1.msra.mxu0 0.0
    %784 = vmatprep.subr.mxu0 0.0
    %785 = vmatpush1.msra.mxu0 0.0
    %786 = vmatprep.subr.mxu0 0.0
    %787 = vmatpush1.msra.mxu0 0.0
    %788 = vmatprep.subr.mxu0 0.0
    %789 = vmatpush1.msra.mxu0 0.0
    %790 = vmatprep.subr.mxu0 0.0
    %791 = vmatpush1.msra.mxu0 0.0
    %792 = vmatprep.subr.mxu0 0.0
    %793 = vmatpush1.msra.mxu0 0.0
    %794 = vmatprep.mubr.f32.mxu0 0.0
    %795 = vmatmul.mubr.f32.gmra.mrb[0].mxu0 %v728
    %v796 = vpop.f32.mrb[0].mxu0
    %v797 = vadd.f32 0.0, %v796
    %v798 = vpop.f32.mrb[0].mxu0
    %799 = vdwg.mxu0
    %v800 = vadd.f32 %v726, %v797
    %v801 = vtanh.pop %v800
    %802 = vst.msk [vmem:[#allocation2 + $0x6] sm:$0x1] %vm339, %v801
    %v803 = vld [vmem:[#allocation2 + $0x7] sm:$0x1]
    %v805 = vsel %vm260, %v801, 0
    %807 = vmatprep.subr.mxu0 0.0
    %808 = vmatpush1.msra.mxu0 %v114
    %809 = vmatprep.subr.mxu0 0.0
    %810 = vmatpush1.msra.mxu0 %v115
    %811 = vmatprep.subr.mxu0 0.0
    %812 = vmatpush1.msra.mxu0 %v116
    %813 = vmatprep.subr.mxu0 0.0
    %814 = vmatpush1.msra.mxu0 %v117
    %815 = vmatprep.subr.mxu0 0.0
    %816 = vmatpush1.msra.mxu0 %v118
    %817 = vmatprep.subr.mxu0 0.0
    %818 = vmatpush1.msra.mxu0 %v119
    %819 = vmatprep.subr.mxu0 0.0
    %820 = vmatpush1.msra.mxu0 %v120
    %821 = vmatprep.subr.mxu0 0.0
    %822 = vmatpush1.msra.mxu0 %v121
    %823 = vmatprep.subr.mxu0 0.0
    %824 = vmatpush1.msra.mxu0 0.0
    %825 = vmatprep.subr.mxu0 0.0
    %826 = vmatpush1.msra.mxu0 0.0
    %827 = vmatprep.subr.mxu0 0.0
    %828 = vmatpush1.msra.mxu0 0.0
    %829 = vmatprep.subr.mxu0 0.0
    %830 = vmatpush1.msra.mxu0 0.0
    %831 = vmatprep.subr.mxu0 0.0
    %832 = vmatpush1.msra.mxu0 0.0
    %833 = vmatprep.subr.mxu0 0.0
    %834 = vmatpush1.msra.mxu0 0.0
    %835 = vmatprep.subr.mxu0 0.0
    %836 = vmatpush1.msra.mxu0 0.0
    %837 = vmatprep.subr.mxu0 0.0
    %838 = vmatpush1.msra.mxu0 0.0
    %839 = vmatprep.subr.mxu0 0.0
    %840 = vmatpush1.msra.mxu0 0.0
    %841 = vmatprep.subr.mxu0 0.0
    %842 = vmatpush1.msra.mxu0 0.0
    %843 = vmatprep.subr.mxu0 0.0
    %844 = vmatpush1.msra.mxu0 0.0
    %845 = vmatprep.subr.mxu0 0.0
    %846 = vmatpush1.msra.mxu0 0.0
    %847 = vmatprep.subr.mxu0 0.0
    %848 = vmatpush1.msra.mxu0 0.0
    %849 = vmatprep.subr.mxu0 0.0
    %850 = vmatpush1.msra.mxu0 0.0
    %851 = vmatprep.subr.mxu0 0.0
    %852 = vmatpush1.msra.mxu0 0.0
    %853 = vmatprep.subr.mxu0 0.0
    %854 = vmatpush1.msra.mxu0 0.0
    %855 = vmatprep.subr.mxu0 0.0
    %856 = vmatpush1.msra.mxu0 0.0
    %857 = vmatprep.subr.mxu0 0.0
    %858 = vmatpush1.msra.mxu0 0.0
    %859 = vmatprep.subr.mxu0 0.0
    %860 = vmatpush1.msra.mxu0 0.0
    %861 = vmatprep.subr.mxu0 0.0
    %862 = vmatpush1.msra.mxu0 0.0
    %863 = vmatprep.subr.mxu0 0.0
    %864 = vmatpush1.msra.mxu0 0.0
    %865 = vmatprep.subr.mxu0 0.0
    %866 = vmatpush1.msra.mxu0 0.0
    %867 = vmatprep.subr.mxu0 0.0
    %868 = vmatpush1.msra.mxu0 0.0
    %869 = vmatprep.subr.mxu0 0.0
    %870 = vmatpush1.msra.mxu0 0.0
    %871 = vmatprep.mubr.f32.mxu0 0.0
    %872 = vmatmul.mubr.f32.gmra.mrb[0].mxu0 %v805
    %v873 = vpop.f32.mrb[0].mxu0
    %v874 = vadd.f32 0.0, %v873
    %v875 = vpop.f32.mrb[0].mxu0
    %876 = vdwg.mxu0
    %v877 = vadd.f32 %v803, %v874
    %v878 = vtanh.pop %v877
    %879 = vst.msk [vmem:[#allocation2 + $0x7] sm:$0x1] %vm339, %v878
    %880 = vst.msk [vmem:[#allocation16] sm:$0x1] %vm339, %v878
    %v881 = vld [vmem:[#allocation2] sm:$0xff]
    %v882 = vld [vmem:[#allocation13] sm:$0xff]
    %v883 = vld [vmem:[#allocation13 + $0x8] sm:$0xff]
    %v884 = vld [vmem:[#allocation13 + $0x10] sm:$0xff]
    %v885 = vld [vmem:[#allocation13 + $0x18] sm:$0xff]
    %v886 = vld [vmem:[#allocation13 + $0x20] sm:$0xff]
    %v887 = vld [vmem:[#allocation13 + $0x28] sm:$0xff]
    %v888 = vld [vmem:[#allocation13 + $0x30] sm:$0xff]
    %v889 = vld [vmem:[#allocation13 + $0x38] sm:$0xff]
    %v891 = vsel %vm260, %v881, 0
    %893 = vmatprep.subr.mxu0 0.0
    %894 = vmatpush1.msra.mxu0 %v882
    %895 = vmatprep.subr.mxu0 0.0
    %896 = vmatpush1.msra.mxu0 %v883
    %897 = vmatprep.subr.mxu0 0.0
    %898 = vmatpush1.msra.mxu0 %v884
    %899 = vmatprep.subr.mxu0 0.0
    %900 = vmatpush1.msra.mxu0 %v885
    %901 = vmatprep.subr.mxu0 0.0
    %902 = vmatpush1.msra.mxu0 %v886
    %903 = vmatprep.subr.mxu0 0.0
    %904 = vmatpush1.msra.mxu0 %v887
    %905 = vmatprep.subr.mxu0 0.0
    %906 = vmatpush1.msra.mxu0 %v888
    %907 = vmatprep.subr.mxu0 0.0
    %908 = vmatpush1.msra.mxu0 %v889
    %909 = vmatprep.subr.mxu0 0.0
    %910 = vmatpush1.msra.mxu0 0.0
    %911 = vmatprep.subr.mxu0 0.0
    %912 = vmatpush1.msra.mxu0 0.0
    %913 = vmatprep.subr.mxu0 0.0
    %914 = vmatpush1.msra.mxu0 0.0
    %915 = vmatprep.subr.mxu0 0.0
    %916 = vmatpush1.msra.mxu0 0.0
    %917 = vmatprep.subr.mxu0 0.0
    %918 = vmatpush1.msra.mxu0 0.0
    %919 = vmatprep.subr.mxu0 0.0
    %920 = vmatpush1.msra.mxu0 0.0
    %921 = vmatprep.subr.mxu0 0.0
    %922 = vmatpush1.msra.mxu0 0.0
    %923 = vmatprep.subr.mxu0 0.0
    %924 = vmatpush1.msra.mxu0 0.0
    %925 = vmatprep.subr.mxu0 0.0
    %926 = vmatpush1.msra.mxu0 0.0
    %927 = vmatprep.subr.mxu0 0.0
    %928 = vmatpush1.msra.mxu0 0.0
    %929 = vmatprep.subr.mxu0 0.0
    %930 = vmatpush1.msra.mxu0 0.0
    %931 = vmatprep.subr.mxu0 0.0
    %932 = vmatpush1.msra.mxu0 0.0
    %933 = vmatprep.subr.mxu0 0.0
    %934 = vmatpush1.msra.mxu0 0.0
    %935 = vmatprep.subr.mxu0 0.0
    %936 = vmatpush1.msra.mxu0 0.0
    %937 = vmatprep.subr.mxu0 0.0
    %938 = vmatpush1.msra.mxu0 0.0
    %939 = vmatprep.subr.mxu0 0.0
    %940 = vmatpush1.msra.mxu0 0.0
    %941 = vmatprep.subr.mxu0 0.0
    %942 = vmatpush1.msra.mxu0 0.0
    %943 = vmatprep.subr.mxu0 0.0
    %944 = vmatpush1.msra.mxu0 0.0
    %945 = vmatprep.subr.mxu0 0.0
    %946 = vmatpush1.msra.mxu0 0.0
    %947 = vmatprep.subr.mxu0 0.0
    %948 = vmatpush1.msra.mxu0 0.0
    %949 = vmatprep.subr.mxu0 0.0
    %950 = vmatpush1.msra.mxu0 0.0
    %951 = vmatprep.subr.mxu0 0.0
    %952 = vmatpush1.msra.mxu0 0.0
    %953 = vmatprep.subr.mxu0 0.0
    %954 = vmatpush1.msra.mxu0 0.0
    %955 = vmatprep.subr.mxu0 0.0
    %956 = vmatpush1.msra.mxu0 0.0
    %957 = vmatprep.mubr.f32.mxu0 0.0
    %958 = vmatmul.mubr.f32.gmra.mrb[0].mxu0 %v891
    %v959 = vpop.f32.mrb[0].mxu0
    %v960 = vadd.f32 0.0, %v959
    %v961 = vpop.f32.mrb[0].mxu0
    %962 = vdwg.mxu0
    %963 = vxpose.xlu0.b32.start [1/16] %v960, 128
    %964 = vxpose.xlu0.b32.cont [2/16] 0.0, 128
    %965 = vxpose.xlu0.b32.cont [3/16] 0.0, 128
    %966 = vxpose.xlu0.b32.cont [4/16] 0.0, 128
    %967 = vxpose.xlu0.b32.cont [5/16] 0.0, 128
    %968 = vxpose.xlu0.b32.cont [6/16] 0.0, 128
    %969 = vxpose.xlu0.b32.cont [7/16] 0.0, 128
    %970 = vxpose.xlu0.b32.cont [8/16] 0.0, 128
    %971 = vxpose.xlu0.b32.cont [9/16] 0.0, 128
    %972 = vxpose.xlu0.b32.cont [10/16] 0.0, 128
    %973 = vxpose.xlu0.b32.cont [11/16] 0.0, 128
    %974 = vxpose.xlu0.b32.cont [12/16] 0.0, 128
    %975 = vxpose.xlu0.b32.cont [13/16] 0.0, 128
    %976 = vxpose.xlu0.b32.cont [14/16] 0.0, 128
    %977 = vxpose.xlu0.b32.cont [15/16] 0.0, 128
    %978 = vxpose.xlu0.b32.end [16/16] 0.0, 128
    %v979 = vpop.trf.xlu0
    %v980 = vpop.trf.xlu0
    %v981 = vpop.trf.xlu0
    %v982 = vpop.trf.xlu0
    %v983 = vpop.trf.xlu0
    %v984 = vpop.trf.xlu0
    %v985 = vpop.trf.xlu0
    %v986 = vpop.trf.xlu0
    %v987 = vpop.trf.xlu0
    %v988 = vpop.trf.xlu0
    %v989 = vpop.trf.xlu0
    %v990 = vpop.trf.xlu0
    %v991 = vpop.trf.xlu0
    %v992 = vpop.trf.xlu0
    %v993 = vpop.trf.xlu0
    %v994 = vpop.trf.xlu0
    %s995 = sld [smem:[#allocation3]]
    %v996 = vstv %s995
    %v997 = vadd.f32 %v979, %v996
    %v1000 = vunpack.c.l.s4 1966171168
    %v1001 = vunpack.c.0.s8 %v1000
    %v1002 = vlaneseq
    %v1003 = vshrl.u32 %v1002, 7
    %v1004 = vsub.s32 %v1001, %v1003
    %v1005 = vrot.slane %v997, %v1004
    %v1006 = vcombine.high %v1005, %v1005
    %v1008 = vunpack.c.l.s4 1966171168
    %v1009 = vunpack.c.0.s8 %v1008
    %v1010 = vlaneseq
    %v1011 = vshrl.u32 %v1010, 7
    %v1012 = vsub.s32 %v1009, %v1011
    %v1013 = vrot.slane %v1005, %v1012
    %v1015 = vunpack.c.l.s4 1966171168
    %v1016 = vunpack.c.0.s8 %v1015
    %v1017 = vlaneseq
    %v1018 = vshrl.u32 %v1017, 7
    %v1019 = vsub.s32 %v1016, %v1018
    %v1020 = vrot.slane %v1006, %v1019
    %vm1023 = vcmask 57344
    %1024 = vst.msk [vmem:[#allocation15] sm:$0x1] %vm1023, %v1013
    %1025 = vst.msk [vmem:[#allocation15 + $0x1] sm:$0x1] %vm1023, %v1020
    // Predicated region
    $region58: #{tpu_custom_call.1} parent=1 // pred_check
      _
    $region59: #{tpu_custom_call.1} parent=1 // pred_check_branch
      %1027 = sbr.rel (0) target = $region61
    $region60: #{tpu_custom_call.1} parent=1 // pred_region
      %s1029 = ssub.s32 32, 32
      %1030 = vsyncadd [#allocation6], %s1029
      %s1031 = sshll.u32 [#allocation15], 4
      %s1032 = int_to_ptr.vmem [resolvable:$true] %s1031
      %1037 = dma.vmem_to_hbm [thread:$0]  %s1032, 32, %s7, [#allocation6], 16, 16, 1
    $region61: #{tpu_custom_call.1} parent=1 // pred_fallthru
      _
    // Predicated region
    $region62: #{tpu_custom_call.1} parent=1 // pred_check
      _
    $region63: #{tpu_custom_call.1} parent=1 // pred_check_branch
      %1039 = sbr.rel (0) target = $region65
    $region64: #{tpu_custom_call.1} parent=1 // pred_region
      %s1041 = ssub.s32 16, 16
      %1042 = vsyncadd [#allocation17], %s1041
      %s1044 = sshll.u32 [#allocation16], 4
      %s1045 = int_to_ptr.vmem [resolvable:$true] %s1044
      %1047 = dma.vmem_to_hbm [thread:$0]  %s1045, 16, %s8, [#allocation17]
    $region65: #{tpu_custom_call.1} parent=1 // pred_fallthru
      _
    // Predicated region
    $region66: #{tpu_custom_call.1} parent=1 // pred_check
      _
    $region67: #{tpu_custom_call.1} parent=1 // pred_check_branch
      %1049 = sbr.rel (0) target = $region69
    $region68: #{tpu_custom_call.1} parent=1 // pred_region
      %1050 = dma.done [#allocation6], 32
    $region69: #{tpu_custom_call.1} parent=1 // pred_fallthru
      _
    // Predicated region
    $region70: #{tpu_custom_call.1} parent=1 // pred_check
      _
    $region71: #{tpu_custom_call.1} parent=1 // pred_check_branch
      %1052 = sbr.rel (0) target = $region73
    $region72: #{tpu_custom_call.1} parent=1 // pred_region
      %1053 = dma.done [#allocation17], 16
    $region73: #{tpu_custom_call.1} parent=1 // pred_fallthru
      _
    %1054 = vsyncpa [#allocation5], 1
    %1055 = vsyncpa [#allocation8], 1
    %1056 = vsyncpa [#allocation11], 1
    %1057 = vsyncpa [#allocation14], 1
    %1058 = vsyncpa [#allocation6], 1
    %1059 = vsyncpa [#allocation17], 1

</llo_original>
